<compile_context>
chip_gen: v7x
topology: tpu7x:2x2x1
jax: 0.10.0
libtpu: 0.0.40
codegen_flags: <defaults>
</compile_context>

<pallas_src>
import functools

import jax
import jax.numpy as jnp
from jax.experimental import pallas as pl
from jax.experimental.pallas import tpu as pltpu


def _test_loss_kernel(wc_ref, wa_ref, cp_ref, out_ref, *,
                      commission_ratio, interest_rate):
    # wc: (T, 1, TB) cash weights (cash price == 1)
    # wa: (T, A, TB) risky-asset weights
    # cp: (T, A, TB) relative close prices
    wc = wc_ref[...]
    wa = wa_ref[...]
    cp = cp_ref[...]

    # element_reward and per-period reward (dot product over the asset axis).
    elem = wa * cp                                                 # (T, A, TB)
    reward = wc + jnp.sum(elem, axis=1, keepdims=True)             # (T, 1, TB)

    # interest accrues only on negative element rewards (the cash column's
    # element reward is wc itself since its price is 1).
    interest = (jnp.minimum(wc, 0.0)
                + jnp.sum(jnp.minimum(elem, 0.0), axis=1, keepdims=True)
                ) * interest_rate                                  # (T, 1, TB)

    # future_omega = element_reward / reward ; EUP reciprocal instead of divide.
    inv_reward = pl.reciprocal(reward, approx=True)                # (T, 1, TB)
    fo_c = wc * inv_reward                                         # (T, 1, TB)
    fo_a = elem * inv_reward                                       # (T, A, TB)

    # commission cost: sum over all columns of |future_omega[t-1] - w[t]|,
    # only for t >= 1 (time shift = free leading-axis slice in this layout).
    cost = (jnp.abs(fo_c[:-1] - wc[1:])
            + jnp.sum(jnp.abs(fo_a[:-1] - wa[1:]), axis=1, keepdims=True))
    pure_pc = 1.0 - cost * commission_ratio                        # (T-1, 1, TB)

    r0 = reward[0:1] + interest[0:1]                               # t == 0: pc == 1
    rt = reward[1:] * pure_pc + interest[1:]                       # t >= 1

    # portfolio value: product over time, computed in log domain.
    logpv = jnp.log(r0) + jnp.sum(jnp.log(rt), axis=0, keepdims=True)  # (1,1,TB)

    # merged, lane-dense per-sample output: row 0 = -log(pv), row 1 = pv.
    out_ref[:, 0:1, :] = -logpv
    out_ref[:, 1:2, :] = jnp.exp(logpv)

    # TODO(synk): the size_average=False branch (Sharpe ratio, max_drawdown,
    # St_v list built with .item()) is host-side Python control flow and is
    # not implemented in the kernel.


def _pick_batch_tile(B):
    if B < 128:
        return B                       # tiny batch: one partial-lane tile
    for tb in (1024, 512, 256, 128):
        if B >= tb:
            return tb                  # batch is padded up to a multiple of tb
    return B


def test_loss_pallas(w, y, commission_ratio, interest_rate):
    """w: (B, T, 1, A+1) portfolio weights, y: (B, T, A, F) price features."""
    B, T, _, A1 = w.shape
    A = A1 - 1

    w3 = jnp.reshape(w, (B, T, A1)).astype(jnp.float32)
    close = y[..., 0].astype(jnp.float32)                          # (B, T, A)

    # lane-dense layout: batch on lanes, time leading, assets on sublanes.
    w_cash = jnp.transpose(w3[:, :, 0:1], (1, 2, 0))               # (T, 1, B)
    w_assets = jnp.transpose(w3[:, :, 1:], (1, 2, 0))              # (T, A, B)
    cp = jnp.transpose(close, (1, 2, 0))                           # (T, A, B)

    TB = _pick_batch_tile(B)
    pad = (-B) % TB
    if pad:
        # neutral padding: all-cash portfolio at unit prices -> pv == 1, log == 0
        w_cash = jnp.pad(w_cash, ((0, 0), (0, 0), (0, pad)), constant_values=1.0)
        w_assets = jnp.pad(w_assets, ((0, 0), (0, 0), (0, pad)), constant_values=0.0)
        cp = jnp.pad(cp, ((0, 0), (0, 0), (0, pad)), constant_values=1.0)
    Bp = B + pad
    num_tiles = Bp // TB

    kernel = functools.partial(
        _test_loss_kernel,
        commission_ratio=float(commission_ratio),
        interest_rate=float(interest_rate),
    )

    out = pl.pallas_call(
        kernel,
        out_shape=jax.ShapeDtypeStruct((num_tiles, 2, TB), jnp.float32),
        grid_spec=pltpu.PrefetchScalarGridSpec(
            num_scalar_prefetch=0,
            grid=(num_tiles,),
            in_specs=[
                pl.BlockSpec((T, 1, TB), lambda i: (0, 0, i)),
                pl.BlockSpec((T, A, TB), lambda i: (0, 0, i)),
                pl.BlockSpec((T, A, TB), lambda i: (0, 0, i)),
            ],
            out_specs=pl.BlockSpec((1, 2, TB), lambda i: (i, 0, 0)),
        ),
        compiler_params=pltpu.CompilerParams(
            dimension_semantics=("parallel",)),
    )(w_cash, w_assets, cp)

    neg_log = jnp.reshape(out[:, 0, :], (Bp,))[:B]                 # batch_loss
    pv = jnp.reshape(out[:, 1, :], (Bp,))[:B]                      # portfolio_value
    return jnp.mean(neg_log), jnp.mean(pv)


def test_loss_reference(w, y, commission_ratio, interest_rate):
    """Pure-JAX mirror of the PyTorch forward (size_average=True path)."""
    B, T, A, _ = y.shape
    close = y[:, :, :, 0:1]                                        # (B,T,A,1)
    cp = jnp.concatenate([jnp.ones((B, T, 1, 1), close.dtype), close], axis=2)
    reward = jnp.matmul(w, cp)                                     # (B,T,1,1)
    cp_r = jnp.reshape(cp, (B, T, 1, A + 1))
    elem = w * cp_r
    interest = jnp.sum(jnp.minimum(elem, 0.0), axis=3,
                       keepdims=True) * interest_rate
    fo = elem / reward
    wt, wt1 = fo[:, :-1], w[:, 1:]
    pure_pc = 1.0 - jnp.sum(jnp.abs(wt - wt1), axis=-1) * commission_ratio
    pure_pc = jnp.concatenate([jnp.ones((B, 1, 1), pure_pc.dtype), pure_pc], axis=1)
    pure_pc = jnp.reshape(pure_pc, (B, T, 1, 1))
    reward = reward * pure_pc + interest
    pv = jnp.prod(reward, axis=1)                                  # (B,1,1)
    loss = jnp.mean(-jnp.log(pv))
    return loss, jnp.mean(pv)


if __name__ == "__main__":
    B, T, A, F = 2, 8, 4, 3            # batch, periods, assets, features
    commission_ratio = 0.0025
    interest_rate = 0.02 / 250

    key = jax.random.PRNGKey(0)
    k1, k2 = jax.random.split(key)
    # portfolio weights (B, T, 1, A+1), rows sum to 1
    w = jax.nn.softmax(jax.random.normal(k1, (B, T, 1, A + 1), jnp.float32), axis=-1)
    # price feature tensor (B, T, A, F); feature 0 = relative close price ~ 1
    y = 1.0 + 0.05 * jax.random.normal(k2, (B, T, A, F), jnp.float32)

    loss, pv_mean = test_loss_pallas(w, y, commission_ratio, interest_rate)
    jax.block_until_ready((loss, pv_mean))

    loss_r, pv_r = test_loss_reference(w, y, commission_ratio, interest_rate)
    assert abs(float(loss) - float(loss_r)) < 2e-4, (float(loss), float(loss_r))
    assert abs(float(pv_mean) - float(pv_r)) < 2e-4, (float(pv_mean), float(pv_r))

    print("KERNEL_OK")
</pallas_src>

<mosaic_0001>
module attributes {stable_mosaic.version = 11 : i64} {
  func.func @_test_loss_kernel(%arg0: i32, %arg1: memref<8x1x2xf32, #tpu.memory_space<vmem>>, %arg2: memref<8x4x2xf32, #tpu.memory_space<vmem>>, %arg3: memref<8x4x2xf32, #tpu.memory_space<vmem>>, %arg4: memref<1x2x2xf32, #tpu.memory_space<vmem>>) attributes {dimension_semantics = [#tpu.dimension_semantics<parallel>], iteration_bounds = array<i64: 1>, scalar_prefetch = 0 : i64, scratch_operands = 0 : i64, tpu.core_type = #tpu.core_type<tc>, window_params = [{transform_indices = @transform_0, window_bounds = array<i64: 8, 1, 2>}, {transform_indices = @transform_1, window_bounds = array<i64: 8, 4, 2>}, {transform_indices = @transform_2, window_bounds = array<i64: 8, 4, 2>}, {transform_indices = @transform_3, window_bounds = array<i64: 1, 2, 2>}]} {
    %c0 = arith.constant 0 : index
    %c0_0 = arith.constant 0 : index
    %c0_1 = arith.constant 0 : index
    %0 = vector.load %arg1[%c0, %c0_0, %c0_1] : memref<8x1x2xf32, #tpu.memory_space<vmem>>, vector<8x1x2xf32>
    %c0_2 = arith.constant 0 : index
    %c0_3 = arith.constant 0 : index
    %c0_4 = arith.constant 0 : index
    %1 = vector.load %arg2[%c0_2, %c0_3, %c0_4] : memref<8x4x2xf32, #tpu.memory_space<vmem>>, vector<8x4x2xf32>
    %c0_5 = arith.constant 0 : index
    %c0_6 = arith.constant 0 : index
    %c0_7 = arith.constant 0 : index
    %2 = vector.load %arg3[%c0_5, %c0_6, %c0_7] : memref<8x4x2xf32, #tpu.memory_space<vmem>>, vector<8x4x2xf32>
    %3 = arith.mulf %1, %2 : vector<8x4x2xf32>
    %cst = arith.constant dense<0.000000e+00> : vector<8x2xf32>
    %4 = vector.multi_reduction <add>, %3, %cst [1] : vector<8x4x2xf32> to vector<8x2xf32>
    %5 = vector.shape_cast %4 : vector<8x2xf32> to vector<8x1x2xf32>
    %6 = arith.addf %0, %5 : vector<8x1x2xf32>
    %cst_8 = arith.constant 0.000000e+00 : f32
    %7 = vector.broadcast %cst_8 : f32 to vector<8x1x2xf32>
    %8 = arith.minimumf %0, %7 : vector<8x1x2xf32>
    %cst_9 = arith.constant 0.000000e+00 : f32
    %9 = vector.broadcast %cst_9 : f32 to vector<8x4x2xf32>
    %10 = arith.minimumf %3, %9 : vector<8x4x2xf32>
    %cst_10 = arith.constant dense<0.000000e+00> : vector<8x2xf32>
    %11 = vector.multi_reduction <add>, %10, %cst_10 [1] : vector<8x4x2xf32> to vector<8x2xf32>
    %12 = vector.shape_cast %11 : vector<8x2xf32> to vector<8x1x2xf32>
    %13 = arith.addf %8, %12 : vector<8x1x2xf32>
    %cst_11 = arith.constant 8.000000e-05 : f32
    %14 = vector.broadcast %cst_11 : f32 to vector<8x1x2xf32>
    %15 = arith.mulf %13, %14 : vector<8x1x2xf32>
    %16 = tpu.reciprocal %6 {approx = true} : vector<8x1x2xf32> -> vector<8x1x2xf32>
    %17 = arith.mulf %0, %16 : vector<8x1x2xf32>
    %18 = vector.broadcast %16 : vector<8x1x2xf32> to vector<8x4x2xf32>
    %19 = arith.mulf %3, %18 : vector<8x4x2xf32>
    %20 = vector.extract_strided_slice %17 {offsets = [0, 0, 0], sizes = [7, 1, 2], strides = [1, 1, 1]} : vector<8x1x2xf32> to vector<7x1x2xf32>
    %21 = vector.extract_strided_slice %0 {offsets = [1, 0, 0], sizes = [7, 1, 2], strides = [1, 1, 1]} : vector<8x1x2xf32> to vector<7x1x2xf32>
    %22 = arith.subf %20, %21 : vector<7x1x2xf32>
    %23 = math.absf %22 : vector<7x1x2xf32>
    %24 = vector.extract_strided_slice %19 {offsets = [0, 0, 0], sizes = [7, 4, 2], strides = [1, 1, 1]} : vector<8x4x2xf32> to vector<7x4x2xf32>
    %25 = vector.extract_strided_slice %1 {offsets = [1, 0, 0], sizes = [7, 4, 2], strides = [1, 1, 1]} : vector<8x4x2xf32> to vector<7x4x2xf32>
    %26 = arith.subf %24, %25 : vector<7x4x2xf32>
    %27 = math.absf %26 : vector<7x4x2xf32>
    %cst_12 = arith.constant dense<0.000000e+00> : vector<7x2xf32>
    %28 = vector.multi_reduction <add>, %27, %cst_12 [1] : vector<7x4x2xf32> to vector<7x2xf32>
    %29 = vector.shape_cast %28 : vector<7x2xf32> to vector<7x1x2xf32>
    %30 = arith.addf %23, %29 : vector<7x1x2xf32>
    %cst_13 = arith.constant 2.500000e-03 : f32
    %31 = vector.broadcast %cst_13 : f32 to vector<7x1x2xf32>
    %32 = arith.mulf %30, %31 : vector<7x1x2xf32>
    %cst_14 = arith.constant 1.000000e+00 : f32
    %33 = vector.broadcast %cst_14 : f32 to vector<7x1x2xf32>
    %34 = arith.subf %33, %32 : vector<7x1x2xf32>
    %35 = vector.extract_strided_slice %6 {offsets = [0, 0, 0], sizes = [1, 1, 2], strides = [1, 1, 1]} : vector<8x1x2xf32> to vector<1x1x2xf32>
    %36 = vector.extract_strided_slice %15 {offsets = [0, 0, 0], sizes = [1, 1, 2], strides = [1, 1, 1]} : vector<8x1x2xf32> to vector<1x1x2xf32>
    %37 = arith.addf %35, %36 : vector<1x1x2xf32>
    %38 = vector.extract_strided_slice %6 {offsets = [1, 0, 0], sizes = [7, 1, 2], strides = [1, 1, 1]} : vector<8x1x2xf32> to vector<7x1x2xf32>
    %39 = arith.mulf %38, %34 : vector<7x1x2xf32>
    %40 = vector.extract_strided_slice %15 {offsets = [1, 0, 0], sizes = [7, 1, 2], strides = [1, 1, 1]} : vector<8x1x2xf32> to vector<7x1x2xf32>
    %41 = arith.addf %39, %40 : vector<7x1x2xf32>
    %42 = math.log %37 : vector<1x1x2xf32>
    %43 = math.log %41 : vector<7x1x2xf32>
    %cst_15 = arith.constant dense<0.000000e+00> : vector<1x2xf32>
    %44 = vector.multi_reduction <add>, %43, %cst_15 [0] : vector<7x1x2xf32> to vector<1x2xf32>
    %45 = vector.shape_cast %44 : vector<1x2xf32> to vector<1x1x2xf32>
    %46 = arith.addf %42, %45 : vector<1x1x2xf32>
    %cst_16 = arith.constant 0.000000e+00 : f32
    %47 = vector.broadcast %cst_16 : f32 to vector<1x1x2xf32>
    %48 = arith.subf %47, %46 : vector<1x1x2xf32>
    %c0_17 = arith.constant 0 : index
    %c0_18 = arith.constant 0 : index
    %c0_19 = arith.constant 0 : index
    %49 = vector.load %arg4[%c0_17, %c0_18, %c0_19] : memref<1x2x2xf32, #tpu.memory_space<vmem>>, vector<1x1x2xf32>
    tpu.vector_store %arg4[%c0_17, %c0_18, %c0_19], %48 {strides = array<i32>} : memref<1x2x2xf32, #tpu.memory_space<vmem>>, vector<1x1x2xf32>,
    %50 = math.exp %46 : vector<1x1x2xf32>
    %c0_20 = arith.constant 0 : index
    %c1 = arith.constant 1 : index
    %c0_21 = arith.constant 0 : index
    %51 = vector.load %arg4[%c0_20, %c1, %c0_21] : memref<1x2x2xf32, #tpu.memory_space<vmem>>, vector<1x1x2xf32>
    tpu.vector_store %arg4[%c0_20, %c1, %c0_21], %50 {strides = array<i32>} : memref<1x2x2xf32, #tpu.memory_space<vmem>>, vector<1x1x2xf32>,
    return
  }
  func.func @transform_0(%arg0: i32) -> (i32, i32, i32) {
    %c0_i32 = arith.constant 0 : i32
    %c0_i32_0 = arith.constant 0 : i32
    %c0_i32_1 = arith.constant 0 : i32
    return %c0_i32, %c0_i32_0, %arg0 : i32, i32, i32
  }
  func.func @transform_1(%arg0: i32) -> (i32, i32, i32) {
    %c0_i32 = arith.constant 0 : i32
    %c0_i32_0 = arith.constant 0 : i32
    %c0_i32_1 = arith.constant 0 : i32
    return %c0_i32, %c0_i32_0, %arg0 : i32, i32, i32
  }
  func.func @transform_2(%arg0: i32) -> (i32, i32, i32) {
    %c0_i32 = arith.constant 0 : i32
    %c0_i32_0 = arith.constant 0 : i32
    %c0_i32_1 = arith.constant 0 : i32
    return %c0_i32, %c0_i32_0, %arg0 : i32, i32, i32
  }
  func.func @transform_3(%arg0: i32) -> (i32, i32, i32) {
    %c0_i32 = arith.constant 0 : i32
    %c0_i32_0 = arith.constant 0 : i32
    %c0_i32_1 = arith.constant 0 : i32
    return %arg0, %c0_i32, %c0_i32_0 : i32, i32, i32
  }
}

</mosaic_0001>

<llo_original>
// kernel: tpu_custom_call.1
$region0: #{tpu_custom_call.1}
  #allocation0 [shape = 'u32[]', space=smem, size = 0x4, offset = 0x4, fixed_abs, tag = 'smem constant byte address 0x4 - core index']
  #allocation1 [shape = 'u32[144,128]{1,0:T(1,128)}', space=vmem, size = 0x12000, scoped, tag = 'internal scratch']
  %s0 = inlined_call_operand.vmem [shape: f32[8,1,2], index: 0, kind: input, shape index: {}]
  %s1 = inlined_call_operand.vmem [shape: f32[8,4,2], index: 1, kind: input, shape index: {}]
  %s2 = inlined_call_operand.vmem [shape: f32[8,4,2], index: 2, kind: input, shape index: {}]
  %s3 = inlined_call_operand.hbm [shape: f32[1,2,2], index: 3, kind: output, shape index: {}]
  %s4 = sld [smem:[#allocation0]]
  $region22: #{tpu_custom_call.1} parent=0
    _
  %s6 = ssub.s32 1, %s4
  %s7 = scalar_select 0, %s6, %s4
  $region1: #{tpu_custom_call.1} parent=0
    #allocation2 [shape = 'u8[1024]{0}', space=vmem, size = 0x400, scoped, tag = 'output window, operand 0, single buffered']
    #allocation3 [shape = 's32[1]{0}', space=sflag, size = 0x4, scoped, tag = 'scoped memory for tpu_custom_call.1']
    %8 = vsyncpa [#allocation3], 0
    // Predicated region
    $region2: #{tpu_custom_call.1} parent=1 // pred_check
      _
    $region3: #{tpu_custom_call.1} parent=1 // pred_check_branch
      %10 = sbr.rel (0) target = $region5
    $region4: #{tpu_custom_call.1} parent=1 // pred_region
      _
    $region5: #{tpu_custom_call.1} parent=1 // pred_fallthru
      _
    // Predicated region
    $region6: #{tpu_custom_call.1} parent=1 // pred_check
      _
    $region7: #{tpu_custom_call.1} parent=1 // pred_check_branch
      %12 = sbr.rel (0) target = $region9
    $region8: #{tpu_custom_call.1} parent=1 // pred_region
      _
    $region9: #{tpu_custom_call.1} parent=1 // pred_fallthru
      _
    // Predicated region
    $region10: #{tpu_custom_call.1} parent=1 // pred_check
      _
    $region11: #{tpu_custom_call.1} parent=1 // pred_check_branch
      %14 = sbr.rel (0) target = $region13
    $region12: #{tpu_custom_call.1} parent=1 // pred_region
      _
    $region13: #{tpu_custom_call.1} parent=1 // pred_fallthru
      _
    %v15 = vld [vmem:[%s0] sm:$0x1]
    %v16 = vld [vmem:[%s0 + $0x1] sm:$0x1]
    %v17 = vld [vmem:[%s0 + $0x2] sm:$0x1]
    %v18 = vld [vmem:[%s0 + $0x3] sm:$0x1]
    %v19 = vld [vmem:[%s0 + $0x4] sm:$0x1]
    %v20 = vld [vmem:[%s0 + $0x5] sm:$0x1]
    %v21 = vld [vmem:[%s0 + $0x6] sm:$0x1]
    %v22 = vld [vmem:[%s0 + $0x7] sm:$0x1]
    %v23 = vld [vmem:[%s1] sm:$0xf]
    %v24 = vld [vmem:[%s1 + $0x4] sm:$0xf]
    %v25 = vld [vmem:[%s1 + $0x8] sm:$0xf]
    %v26 = vld [vmem:[%s1 + $0xc] sm:$0xf]
    %v27 = vld [vmem:[%s1 + $0x10] sm:$0xf]
    %v28 = vld [vmem:[%s1 + $0x14] sm:$0xf]
    %v29 = vld [vmem:[%s1 + $0x18] sm:$0xf]
    %v30 = vld [vmem:[%s1 + $0x1c] sm:$0xf]
    %v31 = vld [vmem:[%s2] sm:$0xf]
    %v32 = vld [vmem:[%s2 + $0x4] sm:$0xf]
    %v33 = vld [vmem:[%s2 + $0x8] sm:$0xf]
    %v34 = vld [vmem:[%s2 + $0xc] sm:$0xf]
    %v35 = vld [vmem:[%s2 + $0x10] sm:$0xf]
    %v36 = vld [vmem:[%s2 + $0x14] sm:$0xf]
    %v37 = vld [vmem:[%s2 + $0x18] sm:$0xf]
    %v38 = vld [vmem:[%s2 + $0x1c] sm:$0xf]
    %v39 = vmul.f32 %v23, %v31
    %v40 = vmul.f32 %v24, %v32
    %v41 = vmul.f32 %v25, %v33
    %v42 = vmul.f32 %v26, %v34
    %v43 = vmul.f32 %v27, %v35
    %v44 = vmul.f32 %v28, %v36
    %v45 = vmul.f32 %v29, %v37
    %v46 = vmul.f32 %v30, %v38
    %vm47 = vcmask 11264
    %v48 = vsel %vm47, %v39, 0.0
    %v49 = vrot.slane %v48, 4
    %v50 = vadd.f32 %v48, %v49
    %v51 = vrot.slane %v50, 2
    %v52 = vadd.f32 %v50, %v51
    %v53 = vrot.slane %v52, 1
    %v54 = vadd.f32 %v52, %v53
    %v55 = vsel %vm47, %v40, 0.0
    %v56 = vrot.slane %v55, 4
    %v57 = vadd.f32 %v55, %v56
    %v58 = vrot.slane %v57, 2
    %v59 = vadd.f32 %v57, %v58
    %v60 = vrot.slane %v59, 1
    %v61 = vadd.f32 %v59, %v60
    %v62 = vsel %vm47, %v41, 0.0
    %v63 = vrot.slane %v62, 4
    %v64 = vadd.f32 %v62, %v63
    %v65 = vrot.slane %v64, 2
    %v66 = vadd.f32 %v64, %v65
    %v67 = vrot.slane %v66, 1
    %v68 = vadd.f32 %v66, %v67
    %v69 = vsel %vm47, %v42, 0.0
    %v70 = vrot.slane %v69, 4
    %v71 = vadd.f32 %v69, %v70
    %v72 = vrot.slane %v71, 2
    %v73 = vadd.f32 %v71, %v72
    %v74 = vrot.slane %v73, 1
    %v75 = vadd.f32 %v73, %v74
    %v76 = vsel %vm47, %v43, 0.0
    %v77 = vrot.slane %v76, 4
    %v78 = vadd.f32 %v76, %v77
    %v79 = vrot.slane %v78, 2
    %v80 = vadd.f32 %v78, %v79
    %v81 = vrot.slane %v80, 1
    %v82 = vadd.f32 %v80, %v81
    %v83 = vsel %vm47, %v44, 0.0
    %v84 = vrot.slane %v83, 4
    %v85 = vadd.f32 %v83, %v84
    %v86 = vrot.slane %v85, 2
    %v87 = vadd.f32 %v85, %v86
    %v88 = vrot.slane %v87, 1
    %v89 = vadd.f32 %v87, %v88
    %v90 = vsel %vm47, %v45, 0.0
    %v91 = vrot.slane %v90, 4
    %v92 = vadd.f32 %v90, %v91
    %v93 = vrot.slane %v92, 2
    %v94 = vadd.f32 %v92, %v93
    %v95 = vrot.slane %v94, 1
    %v96 = vadd.f32 %v94, %v95
    %v97 = vsel %vm47, %v46, 0.0
    %v98 = vrot.slane %v97, 4
    %v99 = vadd.f32 %v97, %v98
    %v100 = vrot.slane %v99, 2
    %v101 = vadd.f32 %v99, %v100
    %v102 = vrot.slane %v101, 1
    %v103 = vadd.f32 %v101, %v102
    %v104 = vadd.f32 %v15, %v54
    %v105 = vadd.f32 %v16, %v61
    %v106 = vadd.f32 %v17, %v68
    %v107 = vadd.f32 %v18, %v75
    %v108 = vadd.f32 %v19, %v82
    %v109 = vadd.f32 %v20, %v89
    %v110 = vadd.f32 %v21, %v96
    %v111 = vadd.f32 %v22, %v103
    %v112 = vmin.f32 %v15, 0.0
    %v113 = vmin.f32 %v16, 0.0
    %v114 = vmin.f32 %v17, 0.0
    %v115 = vmin.f32 %v18, 0.0
    %v116 = vmin.f32 %v19, 0.0
    %v117 = vmin.f32 %v20, 0.0
    %v118 = vmin.f32 %v21, 0.0
    %v119 = vmin.f32 %v22, 0.0
    %v120 = vmin.f32 %v39, 0.0
    %v121 = vmin.f32 %v40, 0.0
    %v122 = vmin.f32 %v41, 0.0
    %v123 = vmin.f32 %v42, 0.0
    %v124 = vmin.f32 %v43, 0.0
    %v125 = vmin.f32 %v44, 0.0
    %v126 = vmin.f32 %v45, 0.0
    %v127 = vmin.f32 %v46, 0.0
    %v128 = vsel %vm47, %v120, 0.0
    %v129 = vrot.slane %v128, 4
    %v130 = vadd.f32 %v128, %v129
    %v131 = vrot.slane %v130, 2
    %v132 = vadd.f32 %v130, %v131
    %v133 = vrot.slane %v132, 1
    %v134 = vadd.f32 %v132, %v133
    %v135 = vsel %vm47, %v121, 0.0
    %v136 = vrot.slane %v135, 4
    %v137 = vadd.f32 %v135, %v136
    %v138 = vrot.slane %v137, 2
    %v139 = vadd.f32 %v137, %v138
    %v140 = vrot.slane %v139, 1
    %v141 = vadd.f32 %v139, %v140
    %v142 = vsel %vm47, %v122, 0.0
    %v143 = vrot.slane %v142, 4
    %v144 = vadd.f32 %v142, %v143
    %v145 = vrot.slane %v144, 2
    %v146 = vadd.f32 %v144, %v145
    %v147 = vrot.slane %v146, 1
    %v148 = vadd.f32 %v146, %v147
    %v149 = vsel %vm47, %v123, 0.0
    %v150 = vrot.slane %v149, 4
    %v151 = vadd.f32 %v149, %v150
    %v152 = vrot.slane %v151, 2
    %v153 = vadd.f32 %v151, %v152
    %v154 = vrot.slane %v153, 1
    %v155 = vadd.f32 %v153, %v154
    %v156 = vsel %vm47, %v124, 0.0
    %v157 = vrot.slane %v156, 4
    %v158 = vadd.f32 %v156, %v157
    %v159 = vrot.slane %v158, 2
    %v160 = vadd.f32 %v158, %v159
    %v161 = vrot.slane %v160, 1
    %v162 = vadd.f32 %v160, %v161
    %v163 = vsel %vm47, %v125, 0.0
    %v164 = vrot.slane %v163, 4
    %v165 = vadd.f32 %v163, %v164
    %v166 = vrot.slane %v165, 2
    %v167 = vadd.f32 %v165, %v166
    %v168 = vrot.slane %v167, 1
    %v169 = vadd.f32 %v167, %v168
    %v170 = vsel %vm47, %v126, 0.0
    %v171 = vrot.slane %v170, 4
    %v172 = vadd.f32 %v170, %v171
    %v173 = vrot.slane %v172, 2
    %v174 = vadd.f32 %v172, %v173
    %v175 = vrot.slane %v174, 1
    %v176 = vadd.f32 %v174, %v175
    %v177 = vsel %vm47, %v127, 0.0
    %v178 = vrot.slane %v177, 4
    %v179 = vadd.f32 %v177, %v178
    %v180 = vrot.slane %v179, 2
    %v181 = vadd.f32 %v179, %v180
    %v182 = vrot.slane %v181, 1
    %v183 = vadd.f32 %v181, %v182
    %v184 = vadd.f32 %v112, %v134
    %v185 = vadd.f32 %v113, %v141
    %v186 = vadd.f32 %v114, %v148
    %v187 = vadd.f32 %v115, %v155
    %v188 = vadd.f32 %v116, %v162
    %v189 = vadd.f32 %v117, %v169
    %v190 = vadd.f32 %v118, %v176
    %v191 = vadd.f32 %v119, %v183
    %v192 = vmul.f32 %v184, 8e-05
    %v193 = vmul.f32 %v185, 8e-05
    %v194 = vmul.f32 %v186, 8e-05
    %v195 = vmul.f32 %v187, 8e-05
    %v196 = vmul.f32 %v188, 8e-05
    %v197 = vmul.f32 %v189, 8e-05
    %v198 = vmul.f32 %v190, 8e-05
    %v199 = vmul.f32 %v191, 8e-05
    %v200 = vrcp.pop %v104
    %v201 = vrcp.pop %v105
    %v202 = vrcp.pop %v106
    %v203 = vrcp.pop %v107
    %v204 = vrcp.pop %v108
    %v205 = vrcp.pop %v109
    %v206 = vrcp.pop %v110
    %v207 = vmul.f32 %v15, %v200
    %v208 = vmul.f32 %v16, %v201
    %v209 = vmul.f32 %v17, %v202
    %v210 = vmul.f32 %v18, %v203
    %v211 = vmul.f32 %v19, %v204
    %v212 = vmul.f32 %v20, %v205
    %v213 = vmul.f32 %v21, %v206
    %v221 = vlaneseq
    %v222 = vshrl.u32 %v221, 7
    %v223 = vsub.s32 0, %v222
    %v224 = vrot.slane %v200, %v223
    %v225 = vlaneseq
    %v226 = vshrl.u32 %v225, 7
    %v227 = vsub.s32 0, %v226
    %v228 = vrot.slane %v201, %v227
    %v229 = vlaneseq
    %v230 = vshrl.u32 %v229, 7
    %v231 = vsub.s32 0, %v230
    %v232 = vrot.slane %v202, %v231
    %v233 = vlaneseq
    %v234 = vshrl.u32 %v233, 7
    %v235 = vsub.s32 0, %v234
    %v236 = vrot.slane %v203, %v235
    %v237 = vlaneseq
    %v238 = vshrl.u32 %v237, 7
    %v239 = vsub.s32 0, %v238
    %v240 = vrot.slane %v204, %v239
    %v241 = vlaneseq
    %v242 = vshrl.u32 %v241, 7
    %v243 = vsub.s32 0, %v242
    %v244 = vrot.slane %v205, %v243
    %v245 = vlaneseq
    %v246 = vshrl.u32 %v245, 7
    %v247 = vsub.s32 0, %v246
    %v248 = vrot.slane %v206, %v247
    %v256 = vmul.f32 %v39, %v224
    %v257 = vmul.f32 %v40, %v228
    %v258 = vmul.f32 %v41, %v232
    %v259 = vmul.f32 %v42, %v236
    %v260 = vmul.f32 %v43, %v240
    %v261 = vmul.f32 %v44, %v244
    %v262 = vmul.f32 %v45, %v248
    %v263 = vsub.f32 %v207, %v16
    %v264 = vsub.f32 %v208, %v17
    %v265 = vsub.f32 %v209, %v18
    %v266 = vsub.f32 %v210, %v19
    %v267 = vsub.f32 %v211, %v20
    %v268 = vsub.f32 %v212, %v21
    %v269 = vsub.f32 %v213, %v22
    %v270 = vand.u32 2147483647, %v263
    %v271 = vand.u32 2147483647, %v264
    %v272 = vand.u32 2147483647, %v265
    %v273 = vand.u32 2147483647, %v266
    %v274 = vand.u32 2147483647, %v267
    %v275 = vand.u32 2147483647, %v268
    %v276 = vand.u32 2147483647, %v269
    %v277 = vsub.f32 %v256, %v24
    %v278 = vsub.f32 %v257, %v25
    %v279 = vsub.f32 %v258, %v26
    %v280 = vsub.f32 %v259, %v27
    %v281 = vsub.f32 %v260, %v28
    %v282 = vsub.f32 %v261, %v29
    %v283 = vsub.f32 %v262, %v30
    %v284 = vand.u32 2147483647, %v277
    %v285 = vand.u32 2147483647, %v278
    %v286 = vand.u32 2147483647, %v279
    %v287 = vand.u32 2147483647, %v280
    %v288 = vand.u32 2147483647, %v281
    %v289 = vand.u32 2147483647, %v282
    %v290 = vand.u32 2147483647, %v283
    %v291 = vsel %vm47, %v284, 0.0
    %v292 = vrot.slane %v291, 4
    %v293 = vadd.f32 %v291, %v292
    %v294 = vrot.slane %v293, 2
    %v295 = vadd.f32 %v293, %v294
    %v296 = vrot.slane %v295, 1
    %v297 = vadd.f32 %v295, %v296
    %v298 = vsel %vm47, %v285, 0.0
    %v299 = vrot.slane %v298, 4
    %v300 = vadd.f32 %v298, %v299
    %v301 = vrot.slane %v300, 2
    %v302 = vadd.f32 %v300, %v301
    %v303 = vrot.slane %v302, 1
    %v304 = vadd.f32 %v302, %v303
    %v305 = vsel %vm47, %v286, 0.0
    %v306 = vrot.slane %v305, 4
    %v307 = vadd.f32 %v305, %v306
    %v308 = vrot.slane %v307, 2
    %v309 = vadd.f32 %v307, %v308
    %v310 = vrot.slane %v309, 1
    %v311 = vadd.f32 %v309, %v310
    %v312 = vsel %vm47, %v287, 0.0
    %v313 = vrot.slane %v312, 4
    %v314 = vadd.f32 %v312, %v313
    %v315 = vrot.slane %v314, 2
    %v316 = vadd.f32 %v314, %v315
    %v317 = vrot.slane %v316, 1
    %v318 = vadd.f32 %v316, %v317
    %v319 = vsel %vm47, %v288, 0.0
    %v320 = vrot.slane %v319, 4
    %v321 = vadd.f32 %v319, %v320
    %v322 = vrot.slane %v321, 2
    %v323 = vadd.f32 %v321, %v322
    %v324 = vrot.slane %v323, 1
    %v325 = vadd.f32 %v323, %v324
    %v326 = vsel %vm47, %v289, 0.0
    %v327 = vrot.slane %v326, 4
    %v328 = vadd.f32 %v326, %v327
    %v329 = vrot.slane %v328, 2
    %v330 = vadd.f32 %v328, %v329
    %v331 = vrot.slane %v330, 1
    %v332 = vadd.f32 %v330, %v331
    %v333 = vsel %vm47, %v290, 0.0
    %v334 = vrot.slane %v333, 4
    %v335 = vadd.f32 %v333, %v334
    %v336 = vrot.slane %v335, 2
    %v337 = vadd.f32 %v335, %v336
    %v338 = vrot.slane %v337, 1
    %v339 = vadd.f32 %v337, %v338
    %v340 = vadd.f32 %v270, %v297
    %v341 = vadd.f32 %v271, %v304
    %v342 = vadd.f32 %v272, %v311
    %v343 = vadd.f32 %v273, %v318
    %v344 = vadd.f32 %v274, %v325
    %v345 = vadd.f32 %v275, %v332
    %v346 = vadd.f32 %v276, %v339
    %v347 = vmul.f32 %v340, 0.0025
    %v348 = vmul.f32 %v341, 0.0025
    %v349 = vmul.f32 %v342, 0.0025
    %v350 = vmul.f32 %v343, 0.0025
    %v351 = vmul.f32 %v344, 0.0025
    %v352 = vmul.f32 %v345, 0.0025
    %v353 = vmul.f32 %v346, 0.0025
    %v354 = vsub.f32 1.0, %v347
    %v355 = vsub.f32 1.0, %v348
    %v356 = vsub.f32 1.0, %v349
    %v357 = vsub.f32 1.0, %v350
    %v358 = vsub.f32 1.0, %v351
    %v359 = vsub.f32 1.0, %v352
    %v360 = vsub.f32 1.0, %v353
    %v361 = vadd.f32 %v104, %v192
    %v362 = vmul.f32 %v105, %v354
    %v363 = vmul.f32 %v106, %v355
    %v364 = vmul.f32 %v107, %v356
    %v365 = vmul.f32 %v108, %v357
    %v366 = vmul.f32 %v109, %v358
    %v367 = vmul.f32 %v110, %v359
    %v368 = vmul.f32 %v111, %v360
    %v369 = vadd.f32 %v362, %v193
    %v370 = vadd.f32 %v363, %v194
    %v371 = vadd.f32 %v364, %v195
    %v372 = vadd.f32 %v365, %v196
    %v373 = vadd.f32 %v366, %v197
    %v374 = vadd.f32 %v367, %v198
    %v375 = vadd.f32 %v368, %v199
    %v376 = vlog2.pop %v361
    %v377 = vmul.f32 %v376, 0.6931472
    %v378 = vlog2.pop %v369
    %v379 = vmul.f32 %v378, 0.6931472
    %v380 = vlog2.pop %v370
    %v381 = vmul.f32 %v380, 0.6931472
    %v382 = vlog2.pop %v371
    %v383 = vmul.f32 %v382, 0.6931472
    %v384 = vlog2.pop %v372
    %v385 = vmul.f32 %v384, 0.6931472
    %v386 = vlog2.pop %v373
    %v387 = vmul.f32 %v386, 0.6931472
    %v388 = vlog2.pop %v374
    %v389 = vmul.f32 %v388, 0.6931472
    %v390 = vlog2.pop %v375
    %v391 = vmul.f32 %v390, 0.6931472
    %vm392 = vcmask 8192
    %v393 = vsel %vm392, %v379, 0.0
    %v394 = vsel %vm392, %v381, 0.0
    %v395 = vadd.f32 %v393, %v394
    %v396 = vsel %vm392, %v383, 0.0
    %v397 = vadd.f32 %v395, %v396
    %v398 = vsel %vm392, %v385, 0.0
    %v399 = vadd.f32 %v397, %v398
    %v400 = vsel %vm392, %v387, 0.0
    %v401 = vadd.f32 %v399, %v400
    %v402 = vsel %vm392, %v389, 0.0
    %v403 = vadd.f32 %v401, %v402
    %v404 = vsel %vm392, %v391, 0.0
    %v405 = vadd.f32 %v403, %v404
    %v406 = vadd.f32 %v377, %v405
    %v407 = vsub.f32 0.0, %v406
    %408 = vst.msk [vmem:[#allocation2] sm:$0x1] %vm392, %v407
    %v409 = vmul.f32 %v406, 1.442695
    %v410 = vpow.pop %v409
    %411 = vst.msk [vmem:[#allocation2 + $0x1] sm:$0x1] %vm392, %v410
    // Predicated region
    $region14: #{tpu_custom_call.1} parent=1 // pred_check
      _
    $region15: #{tpu_custom_call.1} parent=1 // pred_check_branch
      %413 = sbr.rel (0) target = $region17
    $region16: #{tpu_custom_call.1} parent=1 // pred_region
      %s415 = ssub.s32 32, 32
      %416 = vsyncadd [#allocation3], %s415
      %s418 = sshll.u32 [#allocation2], 4
      %s419 = int_to_ptr.vmem [resolvable:$true] %s418
      %421 = dma.vmem_to_hbm [thread:$0]  %s419, 32, %s3, [#allocation3]
    $region17: #{tpu_custom_call.1} parent=1 // pred_fallthru
      _
    // Predicated region
    $region18: #{tpu_custom_call.1} parent=1 // pred_check
      _
    $region19: #{tpu_custom_call.1} parent=1 // pred_check_branch
      %423 = sbr.rel (0) target = $region21
    $region20: #{tpu_custom_call.1} parent=1 // pred_region
      %424 = dma.done [#allocation3], 32
    $region21: #{tpu_custom_call.1} parent=1 // pred_fallthru
      _
    %425 = vsyncpa [#allocation3], 1

</llo_original>
